<compile_context>
chip_gen: v6e
topology: v6e:2x2x1
jax: 0.10.0
libtpu: 0.0.40
codegen_flags: <defaults>
</compile_context>

<pallas_src>
import math
import functools

import jax
import jax.numpy as jnp
from jax import lax
from jax.experimental import pallas as pl
from jax.experimental.pallas import tpu as pltpu

# Finite "minus infinity": exp() underflows to exactly 0, no -inf arithmetic.
NEG_INF = -1e30


def _pick_tile(n, candidates):
    for c in candidates:
        if c <= n and n % c == 0:
            return c
    return n


def _vmem_limit(block_bytes, scratch_bytes=0):
    # Blocks are double-buffered by the pipeline; add generous headroom and
    # clamp to a sane range for every TPU generation.
    est = 2 * block_bytes + scratch_bytes
    return int(min(max(4 * est, 32 * 1024 * 1024), 100 * 1024 * 1024))


def _widen(x, w):
    """Widen a lane-replicated (rows, sw) stat to (rows, w)."""
    sw = x.shape[-1]
    if w == sw:
        return x
    if w < sw:
        return x[:, :w]
    if w % sw == 0:
        return jnp.concatenate([x] * (w // sw), axis=-1)
    return jnp.broadcast_to(x[:, :1], (x.shape[0], w))


# ----------------------- Kernel A: fused QKV projection -----------------------

def _qkv_proj_kernel(x_ref, w_ref, b_ref, o_ref, acc_ref):
    # MXU inputs stay in their native dtype (bf16-friendly); f32 accumulation.
    # TODO(synk): on v5e cast activations/weights to bf16 upstream for MXU peak.
    @pl.when(pl.program_id(2) == 0)
    def _init():
        acc_ref[...] = jnp.zeros(acc_ref.shape, acc_ref.dtype)

    acc_ref[...] += jnp.dot(x_ref[...], w_ref[...],
                            preferred_element_type=jnp.float32)

    @pl.when(pl.program_id(2) == pl.num_programs(2) - 1)
    def _finalize():
        o_ref[...] = (acc_ref[...] + b_ref[...].astype(jnp.float32)
                      ).astype(o_ref.dtype)


def _qkv_projection(x2d, wqkv, bqkv):
    rows, H = x2d.shape
    N = wqkv.shape[1]                      # 3H
    TM = _pick_tile(rows, (512, 256, 128, 64, 32, 16, 8))
    TN = _pick_tile(N, (512, 256, 128))
    TKP = _pick_tile(H, (512, 256, 128))   # contraction tile (bounds VMEM vs H)

    itemsize = x2d.dtype.itemsize
    block_bytes = (TM * TKP + TKP * TN + TN + TM * TN) * itemsize
    scratch_bytes = TM * TN * 4

    # Grid order: N-panel outermost, rows middle, K innermost (reduction last).
    # With a single K tile the weight panel index is constant across row tiles,
    # so Pallas keeps it resident instead of re-streaming it per row tile.
    return pl.pallas_call(
        _qkv_proj_kernel,
        out_shape=jax.ShapeDtypeStruct((rows, N), x2d.dtype),
        grid=(N // TN, rows // TM, H // TKP),
        in_specs=[
            pl.BlockSpec((TM, TKP), lambda j, i, k: (i, k)),   # activations
            pl.BlockSpec((TKP, TN), lambda j, i, k: (k, j)),   # fused weight
            pl.BlockSpec((1, TN), lambda j, i, k: (0, j)),     # fused bias
        ],
        out_specs=pl.BlockSpec((TM, TN), lambda j, i, k: (i, j)),
        scratch_shapes=[pltpu.VMEM((TM, TN), jnp.float32)],
        compiler_params=pltpu.CompilerParams(
            dimension_semantics=("parallel", "parallel", "arbitrary"),
            vmem_limit_bytes=_vmem_limit(block_bytes, scratch_bytes)),
    )(x2d, wqkv, bqkv)


# ------------------ Kernel B: flash-style causal attention --------------------

def _flash_attn_kernel(q_ref, k_ref, v_ref, mask_ref, o_ref,
                       m_ref, l_ref, acc_ref, *, tq, tk):
    qi = pl.program_id(2)
    ki = pl.program_id(3)
    d = acc_ref.shape[-1]

    first_row = qi * tq
    last_row = first_row + (tq - 1)
    first_col = ki * tk
    last_col = first_col + (tk - 1)

    @pl.when(ki == 0)
    def _init():
        m_ref[...] = jnp.full(m_ref.shape, -jnp.inf, m_ref.dtype)
        l_ref[...] = jnp.zeros(l_ref.shape, l_ref.dtype)
        acc_ref[...] = jnp.zeros(acc_ref.shape, acc_ref.dtype)

    # Tiles entirely in the causal future contribute nothing; their DMAs are
    # also elided by the clamped kv index_maps in the wrapper.
    @pl.when(first_col <= last_row)
    def _compute():
        q = q_ref[0, :, 0, 0, :]        # (tq, d); 1/sqrt(d) pre-folded into Wq
        k = k_ref[0, :, 0, 0, :]        # (tk, d)
        v = v_ref[0, :, 0, 0, :]        # (tk, d)
        # Finite-mask contract: clamp HF-style -inf masks to a finite value.
        amask = jnp.maximum(mask_ref[...].astype(jnp.float32), NEG_INF)  # (1, tk)

        # Native-dtype MXU inputs, f32 accumulation; contraction on the minor
        # dim of both operands avoids an explicit transpose of k.
        s = jnp.einsum('qd,kd->qk', q, k,
                       preferred_element_type=jnp.float32) + amask

        def _update(s_masked):
            m_prev = m_ref[...]                                     # (tq, sw)
            l_prev = l_ref[...]
            m_curr = jnp.max(s_masked, axis=-1, keepdims=True)      # (tq, 1)
            m_next = jnp.maximum(m_prev, m_curr)                    # (tq, sw)
            alpha = jnp.exp(m_prev - m_next)                        # (tq, sw)
            p = jnp.exp(s_masked - _widen(m_next, tk))              # (tq, tk)
            l_ref[...] = alpha * l_prev + jnp.sum(p, axis=-1, keepdims=True)
            acc_ref[...] = _widen(alpha, d) * acc_ref[...] + jnp.dot(
                p.astype(v.dtype), v, preferred_element_type=jnp.float32)
            m_ref[...] = m_next

        # Interior tiles: every key is causally visible -> no mask math at all.
        @pl.when(last_col <= first_row)
        def _interior():
            _update(s)

        # Diagonal-straddling tiles: apply the causal fill.
        @pl.when(last_col > first_row)
        def _diagonal():
            row = first_row + lax.broadcasted_iota(jnp.int32, (tq, tk), 0)
            col = first_col + lax.broadcasted_iota(jnp.int32, (tq, tk), 1)
            _update(jnp.where(row >= col, s, NEG_INF))

    @pl.when(ki == pl.num_programs(3) - 1)
    def _finalize():
        # Every causal row sees key 0 with a finite score, so l >= 1 and the
        # reference's isnan(attn)->0 patch is a no-op here.
        inv = pl.reciprocal(l_ref[...], approx=True)                # EUP slot
        o_ref[0, :, 0, :] = (acc_ref[...] * _widen(inv, d)).astype(o_ref.dtype)
        # TODO(synk): attention-prob dropout is identity (eval mode / p == 0).


def _flash_attention(qkv5, mask2d):
    """qkv5: (B, T, 3, NH, D) free view of the projection output."""
    B, T, _, NH, D = qkv5.shape
    # TODO(synk): sweep TQ up to 512 on v6e (128 MiB VMEM); keep 128-256 on v5e.
    TQ = _pick_tile(T, (256, 128))
    TK = _pick_tile(T, (256, 128))
    sw = min(TK, 128)                     # lane-replicated stats width
    kernel = functools.partial(_flash_attn_kernel, tq=TQ, tk=TK)

    def kv_block(i, j):
        # Clamp to the last kv tile containing any causally-visible key; Pallas
        # skips the copy when the block index repeats.
        return jnp.minimum(j, (i * TQ + (TQ - 1)) // TK)

    q_spec = pl.BlockSpec((1, TQ, 1, 1, D), lambda b, h, i, j: (b, i, 0, h, 0))
    k_spec = pl.BlockSpec((1, TK, 1, 1, D),
                          lambda b, h, i, j: (b, kv_block(i, j), 1, h, 0))
    v_spec = pl.BlockSpec((1, TK, 1, 1, D),
                          lambda b, h, i, j: (b, kv_block(i, j), 2, h, 0))
    mask_spec = pl.BlockSpec((1, TK), lambda b, h, i, j: (b, kv_block(i, j)))
    out_spec = pl.BlockSpec((1, TQ, 1, D), lambda b, h, i, j: (b, i, h, 0))

    itemsize = qkv5.dtype.itemsize
    block_bytes = (TQ * D + 2 * TK * D + TQ * D) * itemsize + TK * 4
    scratch_bytes = (2 * TQ * sw + TQ * D) * 4

    return pl.pallas_call(
        kernel,
        out_shape=jax.ShapeDtypeStruct((B, T, NH, D), qkv5.dtype),
        grid=(B, NH, T // TQ, T // TK),
        in_specs=[q_spec, k_spec, v_spec, mask_spec],
        out_specs=out_spec,
        scratch_shapes=[
            pltpu.VMEM((TQ, sw), jnp.float32),   # running max (lane-replicated)
            pltpu.VMEM((TQ, sw), jnp.float32),   # running denom (lane-replicated)
            pltpu.VMEM((TQ, D), jnp.float32),    # output accumulator
        ],
        compiler_params=pltpu.CompilerParams(
            dimension_semantics=("parallel", "parallel", "parallel", "arbitrary"),
            vmem_limit_bytes=_vmem_limit(block_bytes, scratch_bytes)),
    )(qkv5, qkv5, qkv5, mask2d)


# ------------------------------- Top-level op ---------------------------------

def prepare_qkv_params(wq, bq, wk, bk, wv, bv, head_dim):
    """One-time parameter prep: fuse QKV and fold 1/sqrt(D) into the Q slice."""
    scale = 1.0 / math.sqrt(head_dim)
    wqkv = jnp.concatenate([wq * scale, wk, wv], axis=1)              # (H, 3H)
    bqkv = jnp.concatenate([bq * scale, bk, bv], axis=0).reshape(1, -1)
    return wqkv, bqkv


def causal_self_attention(hidden_states, attention_mask, wqkv, bqkv, num_heads):
    """hidden_states: [B, T, H]; attention_mask: [B, 1, 1, T] (finite, additive);
    wqkv/bqkv from prepare_qkv_params (x @ W + b layout)."""
    B, T, H = hidden_states.shape
    d = H // num_heads

    qkv = _qkv_projection(hidden_states.reshape(B * T, H), wqkv, bqkv)  # (B*T, 3H)
    qkv5 = qkv.reshape(B, T, 3, num_heads, d)                # free view, no copy
    mask2d = attention_mask.reshape(B, T).astype(jnp.float32)

    out4 = _flash_attention(qkv5, mask2d)                    # (B, T, NH, D)
    return out4.reshape(B, T, H)                             # free reshape


# --------------------------------- Reference -----------------------------------

def _reference(hidden_states, attention_mask, wq, bq, wk, bk, wv, bv, num_heads):
    B, T, H = hidden_states.shape
    d = H // num_heads

    def proj(w, b):
        p = hidden_states @ w + b
        return p.reshape(B, T, num_heads, d).transpose(0, 2, 1, 3)

    q, k, v = proj(wq, bq), proj(wk, bk), proj(wv, bv)
    s = jnp.einsum('bhtd,bhsd->bhts', q, k) / math.sqrt(d)
    causal = jnp.tril(jnp.ones((T, T), dtype=bool))[None, None]
    s = jnp.where(causal, s, -jnp.inf) + attention_mask
    a = jax.nn.softmax(s, axis=-1)
    a = jnp.where(jnp.isnan(a), 0.0, a)
    o = jnp.einsum('bhts,bhsd->bhtd', a, v)
    return o.transpose(0, 2, 1, 3).reshape(B, T, H)


if __name__ == "__main__":
    B, T, H, NH = 2, 8, 32, 4
    key = jax.random.PRNGKey(0)
    ks = jax.random.split(key, 8)

    x = jax.random.normal(ks[0], (B, T, H), dtype=jnp.float32)
    wq = jax.random.normal(ks[1], (H, H), dtype=jnp.float32) * (1.0 / math.sqrt(H))
    wk = jax.random.normal(ks[2], (H, H), dtype=jnp.float32) * (1.0 / math.sqrt(H))
    wv = jax.random.normal(ks[3], (H, H), dtype=jnp.float32) * (1.0 / math.sqrt(H))
    bq = jax.random.normal(ks[4], (H,), dtype=jnp.float32) * 0.01
    bk = jax.random.normal(ks[5], (H,), dtype=jnp.float32) * 0.01
    bv = jax.random.normal(ks[6], (H,), dtype=jnp.float32) * 0.01

    # Additive attention mask [B, 1, 1, T]: last two key positions of batch 1 padded.
    attn_mask = jnp.zeros((B, 1, 1, T), dtype=jnp.float32)
    attn_mask = attn_mask.at[1, 0, 0, -2:].set(-10000.0)

    # One-time fused-parameter build (hoisted out of the per-call path).
    wqkv, bqkv = prepare_qkv_params(wq, bq, wk, bk, wv, bv, H // NH)

    out = causal_self_attention(x, attn_mask, wqkv, bqkv, NH)
    out = jax.block_until_ready(out)

    ref = _reference(x, attn_mask, wq, bq, wk, bk, wv, bv, NH)
    assert out.shape == (B, T, H)
    # Tolerance accounts for the approximate EUP reciprocal in the softmax denom.
    assert jnp.allclose(out, ref, atol=2e-3, rtol=2e-3), "mismatch vs reference"

    print("KERNEL_OK")
</pallas_src>

<mosaic_0001>
module attributes {stable_mosaic.version = 11 : i64} {
  func.func @_qkv_proj_kernel(%arg0: i32, %arg1: i32, %arg2: i32, %arg3: memref<16x32xf32, #tpu.memory_space<vmem>>, %arg4: memref<32x96xf32, #tpu.memory_space<vmem>>, %arg5: memref<1x96xf32, #tpu.memory_space<vmem>>, %arg6: memref<16x96xf32, #tpu.memory_space<vmem>>, %arg7: memref<16x96xf32, #tpu.memory_space<vmem>>) attributes {dimension_semantics = [#tpu.dimension_semantics<parallel>, #tpu.dimension_semantics<parallel>, #tpu.dimension_semantics<arbitrary>], iteration_bounds = array<i64: 1, 1, 1>, scalar_prefetch = 0 : i64, scratch_operands = 1 : i64, tpu.core_type = #tpu.core_type<tc>, window_params = [{transform_indices = @transform_0, window_bounds = array<i64: 16, 32>}, {transform_indices = @transform_1, window_bounds = array<i64: 32, 96>}, {transform_indices = @transform_2, window_bounds = array<i64: 1, 96>}, {transform_indices = @transform_3, window_bounds = array<i64: 16, 96>}]} {
    %c0_i32 = arith.constant 0 : i32
    %0 = arith.cmpi eq, %arg2, %c0_i32 : i32
    %1 = arith.extui %0 : i1 to i32
    %c0_i32_0 = arith.constant 0 : i32
    %2 = arith.cmpi ne, %1, %c0_i32_0 : i32
    scf.if %2 {
      %cst_10 = arith.constant 0.000000e+00 : f32
      %12 = vector.broadcast %cst_10 : f32 to vector<16x96xf32>
      %c0_11 = arith.constant 0 : index
      %c0_12 = arith.constant 0 : index
      %13 = vector.load %arg7[%c0_11, %c0_12] : memref<16x96xf32, #tpu.memory_space<vmem>>, vector<16x96xf32>
      tpu.vector_store %arg7[%c0_11, %c0_12], %12 {strides = array<i32>} : memref<16x96xf32, #tpu.memory_space<vmem>>, vector<16x96xf32>,
    } else {
    }
    %c0 = arith.constant 0 : index
    %c0_1 = arith.constant 0 : index
    %3 = vector.load %arg7[%c0, %c0_1] : memref<16x96xf32, #tpu.memory_space<vmem>>, vector<16x96xf32>
    %c0_2 = arith.constant 0 : index
    %c0_3 = arith.constant 0 : index
    %4 = vector.load %arg3[%c0_2, %c0_3] : memref<16x32xf32, #tpu.memory_space<vmem>>, vector<16x32xf32>
    %c0_4 = arith.constant 0 : index
    %c0_5 = arith.constant 0 : index
    %5 = vector.load %arg4[%c0_4, %c0_5] : memref<32x96xf32, #tpu.memory_space<vmem>>, vector<32x96xf32>
    %cst = arith.constant dense<0.000000e+00> : vector<16x96xf32>
    %6 = tpu.matmul %4, %5, %cst {dimension_numbers = #tpu.dot_dimension_numbers<[1], [0], [0], [1], [0, 0, 1, 1], [], []>} : vector<16x32xf32>, vector<32x96xf32>, vector<16x96xf32> -> vector<16x96xf32>
    %7 = arith.addf %3, %6 : vector<16x96xf32>
    %c0_6 = arith.constant 0 : index
    %c0_7 = arith.constant 0 : index
    %8 = vector.load %arg7[%c0_6, %c0_7] : memref<16x96xf32, #tpu.memory_space<vmem>>, vector<16x96xf32>
    tpu.vector_store %arg7[%c0_6, %c0_7], %7 {strides = array<i32>} : memref<16x96xf32, #tpu.memory_space<vmem>>, vector<16x96xf32>,
    %c0_i32_8 = arith.constant 0 : i32
    %9 = arith.cmpi eq, %arg2, %c0_i32_8 : i32
    %10 = arith.extui %9 : i1 to i32
    %c0_i32_9 = arith.constant 0 : i32
    %11 = arith.cmpi ne, %10, %c0_i32_9 : i32
    scf.if %11 {
      %c0_10 = arith.constant 0 : index
      %c0_11 = arith.constant 0 : index
      %12 = vector.load %arg7[%c0_10, %c0_11] : memref<16x96xf32, #tpu.memory_space<vmem>>, vector<16x96xf32>
      %c0_12 = arith.constant 0 : index
      %c0_13 = arith.constant 0 : index
      %13 = vector.load %arg5[%c0_12, %c0_13] : memref<1x96xf32, #tpu.memory_space<vmem>>, vector<1x96xf32>
      %14 = vector.broadcast %13 : vector<1x96xf32> to vector<16x96xf32>
      %15 = arith.addf %12, %14 : vector<16x96xf32>
      %c0_14 = arith.constant 0 : index
      %c0_15 = arith.constant 0 : index
      %16 = vector.load %arg6[%c0_14, %c0_15] : memref<16x96xf32, #tpu.memory_space<vmem>>, vector<16x96xf32>
      tpu.vector_store %arg6[%c0_14, %c0_15], %15 {strides = array<i32>} : memref<16x96xf32, #tpu.memory_space<vmem>>, vector<16x96xf32>,
    } else {
    }
    return
  }
  func.func @transform_0(%arg0: i32, %arg1: i32, %arg2: i32) -> (i32, i32) {
    %c0_i32 = arith.constant 0 : i32
    return %arg1, %arg2 : i32, i32
  }
  func.func @transform_1(%arg0: i32, %arg1: i32, %arg2: i32) -> (i32, i32) {
    %c0_i32 = arith.constant 0 : i32
    return %arg2, %arg0 : i32, i32
  }
  func.func @transform_2(%arg0: i32, %arg1: i32, %arg2: i32) -> (i32, i32) {
    %c0_i32 = arith.constant 0 : i32
    %c0_i32_0 = arith.constant 0 : i32
    return %c0_i32, %arg0 : i32, i32
  }
  func.func @transform_3(%arg0: i32, %arg1: i32, %arg2: i32) -> (i32, i32) {
    %c0_i32 = arith.constant 0 : i32
    return %arg1, %arg0 : i32, i32
  }
}

</mosaic_0001>

<llo_original>
// kernel: tpu_custom_call.1
$region0: #{tpu_custom_call.1}
  #allocation0 [shape = 'u32[]', space=smem, size = 0x4, offset = 0x4, fixed_abs, tag = 'smem constant byte address 0x4 - core index']
  #allocation1 [shape = 'u32[144,128]{1,0:T(1,128)}', space=vmem, size = 0x12000, scoped, tag = 'internal scratch']
  #allocation2 [shape = 'f32[16,96]{1,0:T(8,128)}', space=vmem, size = 0x2000, scoped, tag = 'scratch operand']
  %s0 = inlined_call_operand.hbm [shape: f32[16,32], index: 0, kind: input, shape index: {}]
  %s1 = inlined_call_operand.hbm [shape: f32[32,96], index: 1, kind: input, shape index: {}]
  %s2 = inlined_call_operand.vmem [shape: f32[1,96], index: 2, kind: input, shape index: {}]
  %s3 = inlined_call_operand.hbm [shape: f32[16,96], index: 3, kind: output, shape index: {}]
  %s4 = sld [smem:[#allocation0]]
  $region38: #{tpu_custom_call.1} parent=0
    _
  %s6 = ssub.s32 1, %s4
  %s7 = scalar_select 0, %s6, %s4
  $region1: #{tpu_custom_call.1} parent=0
    #allocation3 [shape = 'u8[8192]{0}', space=vmem, size = 0x2000, scoped, tag = 'input window, operand 0, single buffered']
    #allocation4 [shape = 's32[1]{0}', space=sflag, size = 0x4, scoped, tag = 'scoped memory for tpu_custom_call.1']
    #allocation5 [shape = 's32[1]{0}', space=sflag, size = 0x4, scoped, tag = 'scoped memory for tpu_custom_call.1']
    #allocation6 [shape = 'u8[16384]{0}', space=vmem, size = 0x4000, scoped, tag = 'input window, operand 1, single buffered']
    #allocation7 [shape = 's32[1]{0}', space=sflag, size = 0x4, scoped, tag = 'scoped memory for tpu_custom_call.1']
    #allocation8 [shape = 'u8[8192]{0}', space=vmem, size = 0x2000, scoped, tag = 'output window, operand 0, single buffered']
    %8 = vsyncpa [#allocation4], 0
    %9 = vsyncpa [#allocation7], 0
    %10 = vsyncpa [#allocation5], 0
    // Predicated region
    $region2: #{tpu_custom_call.1} parent=1 // pred_check
      _
    $region3: #{tpu_custom_call.1} parent=1 // pred_check_branch
      %12 = sbr.rel (0) target = $region5
    $region4: #{tpu_custom_call.1} parent=1 // pred_region
      %s14 = ssub.s32 256, 256
      %15 = vsyncadd [#allocation4], %s14
      %s16 = sshll.u32 [#allocation3], 4
      %s17 = int_to_ptr.vmem [resolvable:$true] %s16
      %22 = dma.hbm_to_vmem [thread:$0]  %s0, 256, %s17, [#allocation4], 128, 128, 8
    $region5: #{tpu_custom_call.1} parent=1 // pred_fallthru
      _
    // Predicated region
    $region6: #{tpu_custom_call.1} parent=1 // pred_check
      _
    $region7: #{tpu_custom_call.1} parent=1 // pred_check_branch
      %24 = sbr.rel (0) target = $region9
    $region8: #{tpu_custom_call.1} parent=1 // pred_region
      %s26 = ssub.s32 512, 512
      %27 = vsyncadd [#allocation7], %s26
      %s28 = sshll.u32 [#allocation6], 4
      %s29 = int_to_ptr.vmem [resolvable:$true] %s28
      %34 = dma.hbm_to_vmem [thread:$0]  %s1, 512, %s29, [#allocation7], 128, 128, 8
    $region9: #{tpu_custom_call.1} parent=1 // pred_fallthru
      _
    // Predicated region
    $region10: #{tpu_custom_call.1} parent=1 // pred_check
      _
    $region11: #{tpu_custom_call.1} parent=1 // pred_check_branch
      %36 = sbr.rel (0) target = $region13
    $region12: #{tpu_custom_call.1} parent=1 // pred_region
      _
    $region13: #{tpu_custom_call.1} parent=1 // pred_fallthru
      _
    // Predicated region
    $region14: #{tpu_custom_call.1} parent=1 // pred_check
      _
    $region15: #{tpu_custom_call.1} parent=1 // pred_check_branch
      %38 = sbr.rel (0) target = $region17
    $region16: #{tpu_custom_call.1} parent=1 // pred_region
      %39 = dma.done [#allocation4], 256
    $region17: #{tpu_custom_call.1} parent=1 // pred_fallthru
      _
    // Predicated region
    $region18: #{tpu_custom_call.1} parent=1 // pred_check
      _
    $region19: #{tpu_custom_call.1} parent=1 // pred_check_branch
      %41 = sbr.rel (0) target = $region21
    $region20: #{tpu_custom_call.1} parent=1 // pred_region
      %42 = dma.done [#allocation7], 512
    $region21: #{tpu_custom_call.1} parent=1 // pred_fallthru
      _
    %p43 = scmp.eq.s32.totalorder 0, 0
    // Predicated region
    $region22: #{tpu_custom_call.1} parent=1 // pred_check
      %p44 = pneg %p43
    $region23: #{tpu_custom_call.1} parent=1 // pred_check_branch
      %46 = sbr.rel (%p44) target = $region25
    $region24: #{tpu_custom_call.1} parent=1 // pred_region
      %vm47 = vcmask 785408
      %48 = vst.msk [vmem:[#allocation2] sm:$0xff] %vm47, 0.0
      %49 = vst.msk [vmem:[#allocation2 + $0x8] sm:$0xff] %vm47, 0.0
    $region25: #{tpu_custom_call.1} parent=1 // pred_fallthru
      _
    %v50 = vld [vmem:[#allocation2] sm:$0xff]
    %v51 = vld [vmem:[#allocation2 + $0x8] sm:$0xff]
    %v52 = vld [vmem:[#allocation3] sm:$0xff]
    %v53 = vld [vmem:[#allocation3 + $0x8] sm:$0xff]
    %v54 = vld [vmem:[#allocation6] sm:$0xff]
    %v55 = vld [vmem:[#allocation6 + $0x8] sm:$0xff]
    %v56 = vld [vmem:[#allocation6 + $0x10] sm:$0xff]
    %v57 = vld [vmem:[#allocation6 + $0x18] sm:$0xff]
    %vm58 = vcmask 261120
    %v60 = vsel %vm58, %v52, 0
    %v63 = vsel %vm58, %v53, 0
    %65 = vmatprep.subr.mxu0 0.0
    %66 = vmatpush1.msra.mxu0 0.0
    %67 = vmatprep.subr.mxu0 0.0
    %68 = vmatpush1.msra.mxu0 0.0
    %69 = vmatprep.subr.mxu0 0.0
    %70 = vmatpush1.msra.mxu0 0.0
    %71 = vmatprep.subr.mxu0 0.0
    %72 = vmatpush1.msra.mxu0 0.0
    %73 = vmatprep.subr.mxu0 0.0
    %74 = vmatpush1.msra.mxu0 0.0
    %75 = vmatprep.subr.mxu0 0.0
    %76 = vmatpush1.msra.mxu0 0.0
    %77 = vmatprep.subr.mxu0 0.0
    %78 = vmatpush1.msra.mxu0 0.0
    %79 = vmatprep.subr.mxu0 0.0
    %80 = vmatpush1.msra.mxu0 0.0
    %81 = vmatprep.subr.mxu0 0.0
    %82 = vmatpush1.msra.mxu0 0.0
    %83 = vmatprep.subr.mxu0 0.0
    %84 = vmatpush1.msra.mxu0 0.0
    %85 = vmatprep.subr.mxu0 0.0
    %86 = vmatpush1.msra.mxu0 0.0
    %87 = vmatprep.subr.mxu0 0.0
    %88 = vmatpush1.msra.mxu0 0.0
    %89 = vmatprep.subr.mxu0 0.0
    %90 = vmatpush1.msra.mxu0 %v57
    %91 = vmatprep.subr.mxu0 0.0
    %92 = vmatpush1.msra.mxu0 %v56
    %93 = vmatprep.subr.mxu0 0.0
    %94 = vmatpush1.msra.mxu0 %v55
    %95 = vmatprep.subr.mxu0 0.0
    %96 = vmatpush1.msra.mxu0 %v54
    %97 = vmatprep.subr.mxu0 0.0
    %98 = vmatpush2.msra.mxu0 0.0
    %99 = vmatprep.subr.mxu0 0.0
    %100 = vmatpush2.msra.mxu0 0.0
    %101 = vmatprep.subr.mxu0 0.0
    %102 = vmatpush2.msra.mxu0 0.0
    %103 = vmatprep.subr.mxu0 0.0
    %104 = vmatpush2.msra.mxu0 0.0
    %105 = vmatprep.subr.mxu0 0.0
    %106 = vmatpush2.msra.mxu0 0.0
    %107 = vmatprep.subr.mxu0 0.0
    %108 = vmatpush2.msra.mxu0 0.0
    %109 = vmatprep.subr.mxu0 0.0
    %110 = vmatpush2.msra.mxu0 0.0
    %111 = vmatprep.subr.mxu0 0.0
    %112 = vmatpush2.msra.mxu0 0.0
    %113 = vmatprep.subr.mxu0 0.0
    %114 = vmatpush2.msra.mxu0 0.0
    %115 = vmatprep.subr.mxu0 0.0
    %116 = vmatpush2.msra.mxu0 0.0
    %117 = vmatprep.subr.mxu0 0.0
    %118 = vmatpush2.msra.mxu0 0.0
    %119 = vmatprep.subr.mxu0 0.0
    %120 = vmatpush2.msra.mxu0 0.0
    %121 = vmatprep.subr.mxu0 0.0
    %122 = vmatpush2.msra.mxu0 0.0
    %123 = vmatprep.subr.mxu0 0.0
    %124 = vmatpush2.msra.mxu0 0.0
    %125 = vmatprep.subr.mxu0 0.0
    %126 = vmatpush2.msra.mxu0 0.0
    %127 = vmatprep.subr.mxu0 0.0
    %128 = vmatpush2.msra.mxu0 0.0
    %129 = vmatprep.mubr.f32.mxu0 0.0
    %130 = vmatmul.mubr.f32.gmra.mxu0 %v60
    %v131 = vpop.f32.mrf.mxu0
    %v132 = vadd.f32 0.0, %v131
    %v133 = vpop.f32.mrf.mxu0
    %134 = vmatprep.mubr.f32.mxu0 0.0
    %135 = vmatmul.mubr.f32.gmra.mxu0 %v63
    %v136 = vpop.f32.mrf.mxu0
    %v137 = vadd.f32 0.0, %v136
    %v138 = vpop.f32.mrf.mxu0
    %139 = vdwg.mxu0
    %v140 = vadd.f32 %v50, %v132
    %v141 = vadd.f32 %v51, %v137
    %vm142 = vcmask 785408
    %143 = vst.msk [vmem:[#allocation2] sm:$0xff] %vm142, %v140
    %144 = vst.msk [vmem:[#allocation2 + $0x8] sm:$0xff] %vm142, %v141
    // Predicated region
    $region26: #{tpu_custom_call.1} parent=1 // pred_check
      %p145 = pneg %p43
    $region27: #{tpu_custom_call.1} parent=1 // pred_check_branch
      %147 = sbr.rel (%p145) target = $region29
    $region28: #{tpu_custom_call.1} parent=1 // pred_region
      %v148 = vld [vmem:[#allocation2] sm:$0xff]
      %v149 = vld [vmem:[#allocation2 + $0x8] sm:$0xff]
      %v150 = vld [vmem:[%s2] sm:$0x1]
      %v152 = vlaneseq
      %v153 = vshrl.u32 %v152, 7
      %v154 = vsub.s32 0, %v153
      %v155 = vrot.slane %v150, %v154
      %v157 = vadd.f32 %v148, %v155
      %v158 = vadd.f32 %v149, %v155
      %159 = vst.msk [vmem:[#allocation8] sm:$0xff] %vm142, %v157
      %160 = vst.msk [vmem:[#allocation8 + $0x8] sm:$0xff] %vm142, %v158
    $region29: #{tpu_custom_call.1} parent=1 // pred_fallthru
      _
    // Predicated region
    $region30: #{tpu_custom_call.1} parent=1 // pred_check
      _
    $region31: #{tpu_custom_call.1} parent=1 // pred_check_branch
      %162 = sbr.rel (0) target = $region33
    $region32: #{tpu_custom_call.1} parent=1 // pred_region
      %s164 = ssub.s32 256, 256
      %165 = vsyncadd [#allocation5], %s164
      %s166 = sshll.u32 [#allocation8], 4
      %s167 = int_to_ptr.vmem [resolvable:$true] %s166
      %172 = dma.vmem_to_hbm [thread:$0]  %s167, 256, %s3, [#allocation5], 128, 128, 8
    $region33: #{tpu_custom_call.1} parent=1 // pred_fallthru
      _
    // Predicated region
    $region34: #{tpu_custom_call.1} parent=1 // pred_check
      _
    $region35: #{tpu_custom_call.1} parent=1 // pred_check_branch
      %174 = sbr.rel (0) target = $region37
    $region36: #{tpu_custom_call.1} parent=1 // pred_region
      %175 = dma.done [#allocation5], 256
    $region37: #{tpu_custom_call.1} parent=1 // pred_fallthru
      _
    %176 = vsyncpa [#allocation4], 1
    %177 = vsyncpa [#allocation7], 1
    %178 = vsyncpa [#allocation5], 1

</llo_original>
